<compile_context>
chip_gen: v6e
topology: v6e:2x2x1
jax: 0.10.0
libtpu: 0.0.40
codegen_flags: <defaults>
</compile_context>

<pallas_src>
import functools

import jax
import jax.numpy as jnp
from jax import lax
from jax.experimental import pallas as pl
from jax.experimental.pallas import tpu as pltpu


_TILE_N = 4096  # rows per grid step; sweep 2048-16384 for very large N


def _cls_reg_loss_kernel(pred_ref, side_ref, out_ref, acc_ref, *, n_valid, tile_n):
    # pred_ref: (TN, 2C) f32, class/channel interleaved: lane 2*cls+chan == pred[:, cls, chan]
    # side_ref: (TN, 4)  f32: [label (as float), target0, target1, pad]
    # out_ref : (1, 1)   f32 final loss (written once, on the last grid step)
    # acc_ref : (1, 1)   f32 scratch accumulator, resident across grid steps
    pid = pl.program_id(0)

    @pl.when(pid == 0)
    def _():
        acc_ref[...] = jnp.zeros_like(acc_ref)

    pred = pred_ref[...].astype(jnp.float32)                 # (TN, 2C)
    side = side_ref[...]                                     # (TN, 4)
    tn, c2 = pred.shape
    c = c2 // 2

    idx = side[:, 0:1].astype(jnp.int32) - 1                 # (TN, 1)
    # Emulate PyTorch negative indexing (label 0 -> class C-1), like pred[:, -1, :].
    idx = jnp.where(idx < 0, idx + c, idx)
    t0 = side[:, 1:2]                                        # (TN, 1)
    t1 = side[:, 2:3]                                        # (TN, 1)

    lane = lax.broadcasted_iota(jnp.int32, (tn, c2), 1)      # lane index within 2C
    row = lax.broadcasted_iota(jnp.int32, (tn, 1), 0) + pid * tile_n
    # Keep only the two lanes of this sample's class; drop rows beyond the real
    # batch (sublane padding / partial boundary tile).
    match = ((lane >> 1) == idx) & (row < n_valid)           # (TN, 2C)

    # Broadcast each regression target to every lane of its parity (channel).
    t_lane = jnp.where((lane & 1) == 0, t0, t1)              # (TN, 2C)

    d = pred - t_lane
    ad = jnp.abs(d)
    sl1 = jnp.where(ad < 1.0, 0.5 * d * d, ad - 0.5)         # SmoothL1, beta = 1.0
    acc_ref[...] += jnp.sum(jnp.where(match, sl1, 0.0))

    @pl.when(pid == pl.num_programs(0) - 1)
    def _():
        # mean over 2N elements then *2  ==  total / N (1/N folded at trace time)
        out_ref[...] = acc_ref[...] * (1.0 / n_valid)


def class_wise_regression_loss(pred, labels, targets, *, tile_n=_TILE_N):
    """pred: (N, C, 2) float; labels: (N,) int (1-indexed); targets: (N, 2) float."""
    n, c, two = pred.shape
    assert two == 2

    # (N, C, 2) -> (N, 2C) is a free, contiguous view (no HBM copy).
    pred2c = pred.reshape(n, 2 * c)

    # Merge the two narrow side inputs into one lane-packed array (2 DMA
    # streams total instead of 3). Class labels are small ints, exact in f32.
    side = jnp.concatenate(
        [
            labels.reshape(n, 1).astype(jnp.float32),
            targets.reshape(n, 2).astype(jnp.float32),
            jnp.zeros((n, 1), jnp.float32),
        ],
        axis=1,
    )  # (N, 4)

    # Align rows to the sublane quantum; padded rows are masked in-kernel.
    n_aligned = -(-n // 8) * 8
    if n_aligned != n:
        pred2c = jnp.pad(pred2c, ((0, n_aligned - n), (0, 0)))
        side = jnp.pad(side, ((0, n_aligned - n), (0, 0)))

    tn = min(tile_n, n_aligned)
    grid = (pl.cdiv(n_aligned, tn),)

    kernel = functools.partial(_cls_reg_loss_kernel, n_valid=n, tile_n=tn)

    out = pl.pallas_call(
        kernel,
        out_shape=jax.ShapeDtypeStruct((1, 1), jnp.float32),
        grid_spec=pltpu.PrefetchScalarGridSpec(
            num_scalar_prefetch=0,
            grid=grid,
            in_specs=[
                pl.BlockSpec((tn, 2 * c), lambda i: (i, 0)),
                pl.BlockSpec((tn, 4), lambda i: (i, 0)),
            ],
            out_specs=pl.BlockSpec((1, 1), lambda i: (0, 0)),
            scratch_shapes=[pltpu.VMEM((1, 1), jnp.float32)],
        ),
        compiler_params=pltpu.CompilerParams(
            # Shared accumulator over the N-grid -> reduction axis is serial.
            dimension_semantics=("arbitrary",),
            vmem_limit_bytes=32 * 1024 * 1024,
        ),
    )(pred2c, side)
    return out[0, 0]


def _reference(pred, labels, targets):
    n = pred.shape[0]
    cp = pred[jnp.arange(n), labels - 1, :]
    d = cp - targets
    ad = jnp.abs(d)
    return jnp.mean(jnp.where(ad < 1.0, 0.5 * d * d, ad - 0.5)) * 2.0


if __name__ == "__main__":
    key = jax.random.PRNGKey(0)

    # Primary small test: N proposals, C action classes.
    N, C = 16, 20
    k1, k2, k3, k4, k5, k6 = jax.random.split(key, 6)
    pred = jax.random.normal(k1, (N, C, 2), dtype=jnp.float32)
    labels = jax.random.randint(k2, (N,), 1, C + 1, dtype=jnp.int32)  # 1-indexed
    targets = jax.random.normal(k3, (N, 2), dtype=jnp.float32)

    loss = jax.block_until_ready(class_wise_regression_loss(pred, labels, targets))
    ref = _reference(pred, labels, targets)
    assert jnp.allclose(loss, ref, atol=1e-5, rtol=1e-5), (loss, ref)

    # Secondary check: N not a multiple of 8 (exercises padding + row mask).
    N2, C2 = 13, 7
    pred2 = jax.random.normal(k4, (N2, C2, 2), dtype=jnp.float32)
    labels2 = jax.random.randint(k5, (N2,), 1, C2 + 1, dtype=jnp.int32)
    targets2 = jax.random.normal(k6, (N2, 2), dtype=jnp.float32)

    loss2 = jax.block_until_ready(class_wise_regression_loss(pred2, labels2, targets2))
    ref2 = _reference(pred2, labels2, targets2)
    assert jnp.allclose(loss2, ref2, atol=1e-5, rtol=1e-5), (loss2, ref2)

    print("KERNEL_OK")
</pallas_src>

<mosaic_0001>
module attributes {stable_mosaic.version = 11 : i64} {
  func.func @_cls_reg_loss_kernel(%arg0: i32, %arg1: memref<16x40xf32, #tpu.memory_space<vmem>>, %arg2: memref<16x4xf32, #tpu.memory_space<vmem>>, %arg3: memref<1x1xf32, #tpu.memory_space<vmem>>, %arg4: memref<1x1xf32, #tpu.memory_space<vmem>>) attributes {dimension_semantics = [#tpu.dimension_semantics<arbitrary>], iteration_bounds = array<i64: 1>, scalar_prefetch = 0 : i64, scratch_operands = 1 : i64, tpu.core_type = #tpu.core_type<tc>, window_params = [{transform_indices = @transform_0, window_bounds = array<i64: 16, 40>}, {transform_indices = @transform_1, window_bounds = array<i64: 16, 4>}, {pipeline_mode = #tpu.pipeline_mode<synchronous>, transform_indices = @transform_2, window_bounds = array<i64: 1, 1>}]} {
    %c0_i32 = arith.constant 0 : i32
    %0 = arith.cmpi eq, %arg0, %c0_i32 : i32
    %1 = arith.extui %0 : i1 to i32
    %c0_i32_0 = arith.constant 0 : i32
    %2 = arith.cmpi ne, %1, %c0_i32_0 : i32
    scf.if %2 {
      %cst_19 = arith.constant 0.000000e+00 : f32
      %61 = vector.broadcast %cst_19 : f32 to vector<1x1xf32>
      %c0_20 = arith.constant 0 : index
      %c0_21 = arith.constant 0 : index
      %62 = vector.load %arg4[%c0_20, %c0_21] : memref<1x1xf32, #tpu.memory_space<vmem>>, vector<1x1xf32>
      tpu.vector_store %arg4[%c0_20, %c0_21], %61 {strides = array<i32>} : memref<1x1xf32, #tpu.memory_space<vmem>>, vector<1x1xf32>,
    } else {
    }
    %c0 = arith.constant 0 : index
    %c0_1 = arith.constant 0 : index
    %3 = vector.load %arg1[%c0, %c0_1] : memref<16x40xf32, #tpu.memory_space<vmem>>, vector<16x40xf32>
    %c0_2 = arith.constant 0 : index
    %c0_3 = arith.constant 0 : index
    %4 = vector.load %arg2[%c0_2, %c0_3] : memref<16x4xf32, #tpu.memory_space<vmem>>, vector<16x4xf32>
    %5 = vector.extract_strided_slice %4 {offsets = [0, 0], sizes = [16, 1], strides = [1, 1]} : vector<16x4xf32> to vector<16x1xf32>
    %6 = arith.fptosi %5 : vector<16x1xf32> to vector<16x1xi32>
    %c1_i32 = arith.constant 1 : i32
    %7 = vector.broadcast %c1_i32 : i32 to vector<16x1xi32>
    %8 = arith.subi %6, %7 : vector<16x1xi32>
    %c0_i32_4 = arith.constant 0 : i32
    %9 = vector.broadcast %c0_i32_4 : i32 to vector<16x1xi32>
    %10 = arith.cmpi slt, %8, %9 : vector<16x1xi32>
    %c20_i32 = arith.constant 20 : i32
    %11 = vector.broadcast %c20_i32 : i32 to vector<16x1xi32>
    %12 = arith.addi %8, %11 : vector<16x1xi32>
    %13 = arith.select %10, %12, %8 : vector<16x1xi1>, vector<16x1xi32>
    %14 = vector.extract_strided_slice %4 {offsets = [0, 1], sizes = [16, 1], strides = [1, 1]} : vector<16x4xf32> to vector<16x1xf32>
    %15 = vector.extract_strided_slice %4 {offsets = [0, 2], sizes = [16, 1], strides = [1, 1]} : vector<16x4xf32> to vector<16x1xf32>
    %16 = tpu.iota {dimensions = array<i32: 1>} : vector<16x40xi32>
    %17 = tpu.iota {dimensions = array<i32: 0>} : vector<16x1xi32>
    %c16_i32 = arith.constant 16 : i32
    %18 = arith.muli %arg0, %c16_i32 : i32
    %19 = vector.broadcast %18 : i32 to vector<16x1xi32>
    %20 = arith.addi %17, %19 : vector<16x1xi32>
    %c1_i32_5 = arith.constant 1 : i32
    %21 = vector.broadcast %c1_i32_5 : i32 to vector<16x40xi32>
    %22 = arith.shrsi %16, %21 : vector<16x40xi32>
    %23 = vector.broadcast %13 : vector<16x1xi32> to vector<16x40xi32>
    %24 = arith.cmpi eq, %22, %23 : vector<16x40xi32>
    %c16_i32_6 = arith.constant 16 : i32
    %25 = vector.broadcast %c16_i32_6 : i32 to vector<16x1xi32>
    %26 = arith.cmpi slt, %20, %25 : vector<16x1xi32>
    %27 = vector.broadcast %26 : vector<16x1xi1> to vector<16x40xi1>
    %28 = arith.andi %24, %27 : vector<16x40xi1>
    %c1_i32_7 = arith.constant 1 : i32
    %29 = vector.broadcast %c1_i32_7 : i32 to vector<16x40xi32>
    %30 = arith.andi %16, %29 : vector<16x40xi32>
    %c0_i32_8 = arith.constant 0 : i32
    %31 = vector.broadcast %c0_i32_8 : i32 to vector<16x40xi32>
    %32 = arith.cmpi eq, %30, %31 : vector<16x40xi32>
    %33 = vector.shape_cast %14 : vector<16x1xf32> to vector<16x1xf32>
    %34 = vector.broadcast %33 : vector<16x1xf32> to vector<16x40xf32>
    %35 = vector.shape_cast %15 : vector<16x1xf32> to vector<16x1xf32>
    %36 = vector.broadcast %35 : vector<16x1xf32> to vector<16x40xf32>
    %37 = arith.select %32, %34, %36 : vector<16x40xi1>, vector<16x40xf32>
    %38 = arith.subf %3, %37 : vector<16x40xf32>
    %39 = math.absf %38 : vector<16x40xf32>
    %cst = arith.constant 1.000000e+00 : f32
    %40 = vector.broadcast %cst : f32 to vector<16x40xf32>
    %41 = arith.cmpf olt, %39, %40 : vector<16x40xf32>
    %cst_9 = arith.constant 5.000000e-01 : f32
    %42 = vector.broadcast %cst_9 : f32 to vector<16x40xf32>
    %43 = arith.mulf %42, %38 : vector<16x40xf32>
    %44 = arith.mulf %43, %38 : vector<16x40xf32>
    %cst_10 = arith.constant 5.000000e-01 : f32
    %45 = vector.broadcast %cst_10 : f32 to vector<16x40xf32>
    %46 = arith.subf %39, %45 : vector<16x40xf32>
    %47 = arith.select %41, %44, %46 : vector<16x40xi1>, vector<16x40xf32>
    %c0_11 = arith.constant 0 : index
    %c0_12 = arith.constant 0 : index
    %48 = vector.load %arg4[%c0_11, %c0_12] : memref<1x1xf32, #tpu.memory_space<vmem>>, vector<1x1xf32>
    %cst_13 = arith.constant 0.000000e+00 : f32
    %49 = vector.broadcast %cst_13 : f32 to vector<16x40xf32>
    %50 = arith.select %28, %47, %49 : vector<16x40xi1>, vector<16x40xf32>
    %51 = vector.shape_cast %50 : vector<16x40xf32> to vector<1x16x40xf32>
    %cst_14 = arith.constant dense<0.000000e+00> : vector<1xf32>
    %52 = vector.multi_reduction <add>, %51, %cst_14 [1, 2] : vector<1x16x40xf32> to vector<1xf32>
    %53 = vector.shape_cast %52 : vector<1xf32> to vector<1x1x1xf32>
    %54 = vector.extract %53[0, 0, 0] : f32 from vector<1x1x1xf32>
    %55 = vector.broadcast %54 : f32 to vector<1x1xf32>
    %56 = arith.addf %48, %55 : vector<1x1xf32>
    %c0_15 = arith.constant 0 : index
    %c0_16 = arith.constant 0 : index
    %57 = vector.load %arg4[%c0_15, %c0_16] : memref<1x1xf32, #tpu.memory_space<vmem>>, vector<1x1xf32>
    tpu.vector_store %arg4[%c0_15, %c0_16], %56 {strides = array<i32>} : memref<1x1xf32, #tpu.memory_space<vmem>>, vector<1x1xf32>,
    %c0_i32_17 = arith.constant 0 : i32
    %58 = arith.cmpi eq, %arg0, %c0_i32_17 : i32
    %59 = arith.extui %58 : i1 to i32
    %c0_i32_18 = arith.constant 0 : i32
    %60 = arith.cmpi ne, %59, %c0_i32_18 : i32
    scf.if %60 {
      %c0_19 = arith.constant 0 : index
      %c0_20 = arith.constant 0 : index
      %61 = vector.load %arg4[%c0_19, %c0_20] : memref<1x1xf32, #tpu.memory_space<vmem>>, vector<1x1xf32>
      %cst_21 = arith.constant 6.250000e-02 : f32
      %62 = vector.broadcast %cst_21 : f32 to vector<1x1xf32>
      %63 = arith.mulf %61, %62 : vector<1x1xf32>
      %c0_22 = arith.constant 0 : index
      %c0_23 = arith.constant 0 : index
      %64 = vector.load %arg3[%c0_22, %c0_23] : memref<1x1xf32, #tpu.memory_space<vmem>>, vector<1x1xf32>
      tpu.vector_store %arg3[%c0_22, %c0_23], %63 {strides = array<i32>} : memref<1x1xf32, #tpu.memory_space<vmem>>, vector<1x1xf32>,
    } else {
    }
    return
  }
  func.func @transform_0(%arg0: i32) -> (i32, i32) {
    %c0_i32 = arith.constant 0 : i32
    %c0_i32_0 = arith.constant 0 : i32
    return %arg0, %c0_i32 : i32, i32
  }
  func.func @transform_1(%arg0: i32) -> (i32, i32) {
    %c0_i32 = arith.constant 0 : i32
    %c0_i32_0 = arith.constant 0 : i32
    return %arg0, %c0_i32 : i32, i32
  }
  func.func @transform_2(%arg0: i32) -> (i32, i32) {
    %c0_i32 = arith.constant 0 : i32
    %c0_i32_0 = arith.constant 0 : i32
    %c0_i32_1 = arith.constant 0 : i32
    return %c0_i32, %c0_i32_0 : i32, i32
  }
}

</mosaic_0001>

<llo_original>
// kernel: tpu_custom_call.1
$region0: #{tpu_custom_call.1}
  #allocation0 [shape = 'u32[]', space=smem, size = 0x4, offset = 0x4, fixed_abs, tag = 'smem constant byte address 0x4 - core index']
  #allocation1 [shape = 'u32[144,128]{1,0:T(1,128)}', space=vmem, size = 0x12000, scoped, tag = 'internal scratch']
  #allocation2 [shape = 'f32[1,1]{1,0:T(1,128)}', space=vmem, size = 0x200, scoped, tag = 'scratch operand']
  %s0 = inlined_call_operand.vmem [shape: f32[16,40], index: 0, kind: input, shape index: {}]
  %s1 = inlined_call_operand.vmem [shape: f32[16,4], index: 1, kind: input, shape index: {}]
  %s2 = inlined_call_operand.hbm [shape: f32[1,1], index: 2, kind: output, shape index: {}]
  %s3 = sld [smem:[#allocation0]]
  $region26: #{tpu_custom_call.1} parent=0
    _
  %s5 = ssub.s32 1, %s3
  %s6 = scalar_select 0, %s5, %s3
  $region1: #{tpu_custom_call.1} parent=0
    #allocation3 [shape = 'u8[512]{0}', space=vmem, size = 0x400, scoped, tag = 'output window, operand 0, single buffered']
    #allocation4 [shape = 's32[1]{0}', space=sflag, size = 0x4, scoped, tag = 'scoped memory for tpu_custom_call.1']
    %7 = vsyncpa [#allocation4], 0
    // Predicated region
    $region2: #{tpu_custom_call.1} parent=1 // pred_check
      _
    $region3: #{tpu_custom_call.1} parent=1 // pred_check_branch
      %9 = sbr.rel (0) target = $region5
    $region4: #{tpu_custom_call.1} parent=1 // pred_region
      _
    $region5: #{tpu_custom_call.1} parent=1 // pred_fallthru
      _
    // Predicated region
    $region6: #{tpu_custom_call.1} parent=1 // pred_check
      _
    $region7: #{tpu_custom_call.1} parent=1 // pred_check_branch
      %11 = sbr.rel (0) target = $region9
    $region8: #{tpu_custom_call.1} parent=1 // pred_region
      _
    $region9: #{tpu_custom_call.1} parent=1 // pred_fallthru
      _
    %p12 = scmp.eq.s32.totalorder 0, 0
    // Predicated region
    $region10: #{tpu_custom_call.1} parent=1 // pred_check
      %p13 = pneg %p12
    $region11: #{tpu_custom_call.1} parent=1 // pred_check_branch
      %15 = sbr.rel (%p13) target = $region13
    $region12: #{tpu_custom_call.1} parent=1 // pred_region
      %vm16 = vcmask 0
      %17 = vst.msk [vmem:[#allocation2] sm:$0x1] %vm16, 0.0
    $region13: #{tpu_custom_call.1} parent=1 // pred_fallthru
      _
    %v18 = vld [vmem:[%s0] sm:$0xff]
    %v19 = vld [vmem:[%s0 + $0x8] sm:$0xff]
    %v20 = vld [vmem:[%s1] sm:$0xff]
    %v21 = vld [vmem:[%s1 + $0x8] sm:$0xff]
    %v22 = vcvt.f32.s32.to.zero.pseudo %v20
    %v23 = vcvt.f32.s32.to.zero.pseudo %v21
    %v24 = vsub.s32 %v22, 1
    %v25 = vsub.s32 %v23, 1
    %vm26 = vcmp.lt.s32.totalorder %v24, 0
    %vm27 = vcmp.lt.s32.totalorder %v25, 0
    %v28 = vadd.s32 %v24, 20
    %v29 = vadd.s32 %v25, 20
    %v30 = vsel %vm26, %v28, %v24
    %v31 = vsel %vm27, %v29, %v25
    %v32 = vlaneseq
    %v33 = vand.u32 %v32, 127
    %v34 = vlaneseq
    %v35 = vshrl.u32 %v34, 7
    %v36 = vadd.s32 %v35, 8
    %s37 = smul.u32 0, 16
    %v38 = vstv %s37
    %v39 = vadd.s32 %v35, %v38
    %v40 = vadd.s32 %v36, %v38
    %v41 = vshra.s32 %v33, 1
    %42 = vset.pattern.permute.xlu0 0
    %43 = vperm.xlu0 %42, %v30
    %v44 = vpop.permute.xlu0 %43
    %45 = vset.pattern.permute.xlu0 0
    %46 = vperm.xlu0 %45, %v31
    %v47 = vpop.permute.xlu0 %46
    %vm48 = vcmp.eq.s32.totalorder %v41, %v44
    %vm49 = vcmp.eq.s32.totalorder %v41, %v47
    %vm50 = vcmp.lt.s32.totalorder %v39, 16
    %vm51 = vcmp.lt.s32.totalorder %v40, 16
    %v52 = vsel %vm50, 1, 0
    %v53 = vsel %vm51, 1, 0
    %vm54 = vcmp.eq.s32.totalorder %v52, 1
    %vm55 = vcmp.eq.s32.totalorder %v53, 1
    %vm56 = vmand %vm48, %vm54
    %vm57 = vmand %vm49, %vm55
    %v58 = vand.u32 %v33, 1
    %vm59 = vcmp.eq.s32.totalorder %v58, 0
    %61 = vset.pattern.permute.xlu0 1
    %62 = vperm.xlu0 %61, %v20
    %v63 = vpop.permute.xlu0 %62
    %66 = vset.pattern.permute.xlu0 1
    %67 = vperm.xlu0 %66, %v21
    %v68 = vpop.permute.xlu0 %67
    %70 = vset.pattern.permute.xlu0 2
    %71 = vperm.xlu0 %70, %v20
    %v72 = vpop.permute.xlu0 %71
    %74 = vset.pattern.permute.xlu0 2
    %75 = vperm.xlu0 %74, %v21
    %v76 = vpop.permute.xlu0 %75
    %v78 = vsel %vm59, %v63, %v72
    %v79 = vsel %vm59, %v68, %v76
    %v80 = vsub.f32 %v18, %v78
    %v81 = vsub.f32 %v19, %v79
    %v82 = vand.u32 2147483647, %v80
    %v83 = vand.u32 2147483647, %v81
    %vm84 = vcmp.lt.f32.partialorder %v82, 1.0
    %vm85 = vcmp.lt.f32.partialorder %v83, 1.0
    %v86 = vmul.f32 %v80, 0.5
    %v87 = vmul.f32 %v81, 0.5
    %v88 = vmul.f32 %v86, %v80
    %v89 = vmul.f32 %v87, %v81
    %v90 = vsub.f32 %v82, 0.5
    %v91 = vsub.f32 %v83, 0.5
    %v92 = vsel %vm84, %v88, %v90
    %v93 = vsel %vm85, %v89, %v91
    %v94 = vld [vmem:[#allocation2] sm:$0x1]
    %v95 = vsel %vm56, %v92, 0.0
    %v96 = vsel %vm57, %v93, 0.0
    %vm97 = vcmask 326656
    %v98 = vsel %vm97, %v95, 0.0
    %v99 = vsel %vm97, %v96, 0.0
    %v100 = vadd.f32 %v98, %v99
    %101 = vadd.xlane.f32.xlu0 %v100
    %v102 = vpop.xlane.xlu0 %101
    %v103 = vrot.slane %v102, 4
    %v104 = vadd.f32 %v102, %v103
    %v105 = vrot.slane %v104, 2
    %v106 = vadd.f32 %v104, %v105
    %v107 = vrot.slane %v106, 1
    %v108 = vadd.f32 %v106, %v107
    %s109 = vtos %v108
    %v110 = vstv %s109
    %v111 = vadd.f32 %v94, %v110
    %vm112 = vcmask 0
    %113 = vst.msk [vmem:[#allocation2] sm:$0x1] %vm112, %v111
    // Predicated region
    $region14: #{tpu_custom_call.1} parent=1 // pred_check
      %p114 = pneg %p12
    $region15: #{tpu_custom_call.1} parent=1 // pred_check_branch
      %116 = sbr.rel (%p114) target = $region17
    $region16: #{tpu_custom_call.1} parent=1 // pred_region
      %v117 = vld [vmem:[#allocation2] sm:$0x1]
      %v118 = vmul.f32 %v117, 0.0625
      %119 = vst.msk [vmem:[#allocation3] sm:$0x1] %vm112, %v118
    $region17: #{tpu_custom_call.1} parent=1 // pred_fallthru
      _
    // Predicated region
    $region18: #{tpu_custom_call.1} parent=1 // pred_check
      _
    $region19: #{tpu_custom_call.1} parent=1 // pred_check_branch
      %121 = sbr.rel (0) target = $region21
    $region20: #{tpu_custom_call.1} parent=1 // pred_region
      %s123 = ssub.s32 16, 16
      %124 = vsyncadd [#allocation4], %s123
      %s126 = sshll.u32 [#allocation3], 4
      %s127 = int_to_ptr.vmem [resolvable:$true] %s126
      %129 = dma.vmem_to_hbm [thread:$0]  %s127, 16, %s2, [#allocation4]
    $region21: #{tpu_custom_call.1} parent=1 // pred_fallthru
      _
    // Predicated region
    $region22: #{tpu_custom_call.1} parent=1 // pred_check
      _
    $region23: #{tpu_custom_call.1} parent=1 // pred_check_branch
      %131 = sbr.rel (0) target = $region25
    $region24: #{tpu_custom_call.1} parent=1 // pred_region
      %132 = dma.done [#allocation4], 16
    $region25: #{tpu_custom_call.1} parent=1 // pred_fallthru
      _
    %133 = vsyncpa [#allocation4], 1

</llo_original>
